<compile_context>
chip_gen: v5e
topology: v5e:2x2
jax: 0.10.0
libtpu: 0.0.40
codegen_flags: <defaults>
</compile_context>

<pallas_src>
import functools

import jax
import jax.numpy as jnp
import numpy as np
from jax import lax
from jax.experimental import pallas as pl
from jax.experimental.pallas import tpu as pltpu

# ---- module hyper-parameters (globals in the PyTorch file) ------------------
BIAS = False               # bias of the key/query/value Linear layers
RELU = False               # whether relu() is applied to k, q, v
USE_FORWARD_MASK = False   # corresponds to forward_mask=None in forward()

# ---- problem sizes -----------------------------------------------------------
B = 2        # batch
S = 16       # sequence length (max_len)
D = 32       # d_model
HS = 8       # head_size


# =============================================================================
# Pallas kernel: the whole batch is processed in one invocation (grid=(1,)).
# =============================================================================
def self_attention_kernel(x_ref,                      # (B, S, D)       VMEM
                          w_ref,                      # (D, 3*HS)       VMEM
                          vl_ref,                     # (B, 1) int32    VMEM
                          o_ref,                      # (B, S, HS)      VMEM
                          *, head_size, use_forward_mask, use_relu):
    bsz, seq, d_model = x_ref.shape
    hs = head_size

    # ---- fused q/k/v projection: one MXU matmul instead of three ------------
    x2 = x_ref[...].reshape(bsz * seq, d_model)                         # (B*S, D)
    qkv = jnp.dot(x2, w_ref[...], preferred_element_type=jnp.float32)   # (B*S, 3*HS)
    if use_relu:
        qkv = jnp.maximum(qkv, 0.0)
    q = qkv[:, 0 * hs:1 * hs].reshape(bsz, seq, hs)   # scale already folded into Wq
    k = qkv[:, 1 * hs:2 * hs].reshape(bsz, seq, hs)
    v = qkv[:, 2 * hs:3 * hs].reshape(bsz, seq, hs)

    # ---- batched attention scores for the whole batch -----------------------
    wei = jnp.einsum('bqh,bkh->bqk', q, k,
                     preferred_element_type=jnp.float32)                # (B, S, S)

    # ---- validity mask (fully vectorized broadcast, no per-batch loop) ------
    row_ids = lax.broadcasted_iota(jnp.int32, (bsz, seq, seq), 1)
    col_ids = lax.broadcasted_iota(jnp.int32, (bsz, seq, seq), 2)
    vl = vl_ref[...].reshape(bsz, 1, 1)                                  # (B,1,1)
    valid = (row_ids < vl) & (col_ids < vl)
    if use_forward_mask:                    # tril mask (forward_mask is not None)
        valid = valid & (col_ids <= row_ids)

    # ---- masked softmax on one (B, S, S) slab --------------------------------
    wei = jnp.where(valid, wei, -jnp.inf)
    n_valid = jnp.sum(valid.astype(jnp.float32), axis=-1, keepdims=True)
    row_empty = n_valid == 0.0                                           # (B, S, 1)
    wmax = jnp.where(row_empty, 0.0, jnp.max(wei, axis=-1, keepdims=True))
    e = jnp.exp(wei - wmax)                                              # exp(-inf)=0
    denom = jnp.where(row_empty, 1.0, jnp.sum(e, axis=-1, keepdims=True))
    p = jnp.where(row_empty, 0.0, e * pl.reciprocal(denom, approx=True))
    # TODO(synk): dropout on attention weights is identity (eval mode) -> no RNG.

    out = jnp.einsum('bqk,bkh->bqh', p, v,
                     preferred_element_type=jnp.float32)                 # (B, S, HS)
    # NOTE: HS=8 < 128 lanes -> masked stores; acceptable at this size, repack
    # the output layout wrapper-side only if head_size is scaled up.
    o_ref[...] = out.astype(o_ref.dtype)


# =============================================================================
# wrapper
# =============================================================================
def self_attention(x, valid_lens, wq, wk, wv, use_forward_mask=USE_FORWARD_MASK):
    b, s, d = x.shape
    hs = wq.shape[1]
    scale = hs ** (-0.5)

    # parameter prep (done once): fold 1/sqrt(head_size) into Wq and fuse the
    # three projection matrices into one (D, 3*HS) operand.
    w_qkv = jnp.concatenate([wq * scale, wk, wv], axis=1)
    vl2 = valid_lens.astype(jnp.int32).reshape(b, 1)

    kernel = functools.partial(
        self_attention_kernel, head_size=hs,
        use_forward_mask=use_forward_mask, use_relu=RELU)

    grid_spec = pltpu.PrefetchScalarGridSpec(
        num_scalar_prefetch=0,
        grid=(1,),                             # single step: whole batch at once
        in_specs=[
            pl.BlockSpec((b, s, d),   lambda i: (0, 0, 0)),   # x
            pl.BlockSpec((d, 3 * hs), lambda i: (0, 0)),      # fused W
            pl.BlockSpec((b, 1),      lambda i: (0, 0)),      # valid_lens
        ],
        out_specs=pl.BlockSpec((b, s, hs), lambda i: (0, 0, 0)),
    )

    return pl.pallas_call(
        kernel,
        out_shape=jax.ShapeDtypeStruct((b, s, hs), jnp.float32),
        grid_spec=grid_spec,
        compiler_params=pltpu.CompilerParams(dimension_semantics=("arbitrary",)),
    )(x, w_qkv, vl2)


# =============================================================================
# pure-JAX reference (mirrors the PyTorch forward, eval mode)
# =============================================================================
def reference(x, valid_lens, wq, wk, wv, use_forward_mask=USE_FORWARD_MASK):
    q = x @ wq
    k = x @ wk
    v = x @ wv
    if RELU:
        q, k, v = jax.nn.relu(q), jax.nn.relu(k), jax.nn.relu(v)
    wei = q @ jnp.swapaxes(k, -1, -2) * (k.shape[-1] ** (-0.5))       # (B, S, S)

    s = x.shape[1]
    if use_forward_mask:
        tril = jnp.tril(jnp.ones((s, s)))
        wei = jnp.where(tril == 0, -jnp.inf, wei)

    # create_mask(valid_lens, max_len)
    ar = jnp.arange(s)
    m1 = (ar[None, :] < valid_lens[:, None]).astype(jnp.float32)      # (B, S)
    mask = m1[:, :, None] * m1[:, None, :]                            # (B, S, S)
    wei = jnp.where(mask == 0, -jnp.inf, wei)

    row_mask = jnp.all(jnp.isinf(wei) & (wei < 0), axis=2, keepdims=True)
    wmax = jnp.where(row_mask, 0.0, jnp.max(wei, axis=-1, keepdims=True))
    e = jnp.exp(wei - wmax)
    den = jnp.where(row_mask, 1.0, jnp.sum(e, axis=-1, keepdims=True))
    p = jnp.where(row_mask, 0.0, e / den)
    return p @ v


# =============================================================================
if __name__ == "__main__":
    key = jax.random.PRNGKey(0)
    kx, kq, kk, kv = jax.random.split(key, 4)

    x = jax.random.normal(kx, (B, S, D), jnp.float32)

    # deterministic "nn.Linear"-style init (uniform +- 1/sqrt(fan_in)), bias=False
    lim = 1.0 / np.sqrt(D)
    wq = jax.random.uniform(kq, (D, HS), jnp.float32, -lim, lim)
    wk = jax.random.uniform(kk, (D, HS), jnp.float32, -lim, lim)
    wv = jax.random.uniform(kv, (D, HS), jnp.float32, -lim, lim)

    # valid lengths; one full row and one padded sequence (exercises empty rows)
    valid_lens = jnp.array([S, 10], dtype=jnp.int32)

    out = self_attention(x, valid_lens, wq, wk, wv)
    out = jax.block_until_ready(out)

    ref = reference(x, valid_lens, wq, wk, wv)
    # tolerance leaves headroom for the EUP approximate reciprocal
    np.testing.assert_allclose(np.asarray(out), np.asarray(ref),
                               rtol=5e-3, atol=5e-3)

    print("KERNEL_OK")
</pallas_src>

<mosaic_0001>
module attributes {stable_mosaic.version = 11 : i64} {
  func.func @self_attention_kernel(%arg0: i32, %arg1: memref<2x16x32xf32, #tpu.memory_space<vmem>>, %arg2: memref<32x24xf32, #tpu.memory_space<vmem>>, %arg3: memref<2x1xi32, #tpu.memory_space<vmem>>, %arg4: memref<2x16x8xf32, #tpu.memory_space<vmem>>) attributes {dimension_semantics = [#tpu.dimension_semantics<arbitrary>], iteration_bounds = array<i64: 1>, scalar_prefetch = 0 : i64, scratch_operands = 0 : i64, tpu.core_type = #tpu.core_type<tc>, window_params = [{pipeline_mode = #tpu.pipeline_mode<synchronous>, transform_indices = @transform_0, window_bounds = array<i64: 2, 16, 32>}, {pipeline_mode = #tpu.pipeline_mode<synchronous>, transform_indices = @transform_1, window_bounds = array<i64: 32, 24>}, {pipeline_mode = #tpu.pipeline_mode<synchronous>, transform_indices = @transform_2, window_bounds = array<i64: 2, 1>}, {pipeline_mode = #tpu.pipeline_mode<synchronous>, transform_indices = @transform_3, window_bounds = array<i64: 2, 16, 8>}]} {
    %c0 = arith.constant 0 : index
    %c0_0 = arith.constant 0 : index
    %c0_1 = arith.constant 0 : index
    %0 = vector.load %arg1[%c0, %c0_0, %c0_1] : memref<2x16x32xf32, #tpu.memory_space<vmem>>, vector<2x16x32xf32>
    %1 = vector.shape_cast %0 : vector<2x16x32xf32> to vector<32x32xf32>
    %c0_2 = arith.constant 0 : index
    %c0_3 = arith.constant 0 : index
    %2 = vector.load %arg2[%c0_2, %c0_3] : memref<32x24xf32, #tpu.memory_space<vmem>>, vector<32x24xf32>
    %cst = arith.constant dense<0.000000e+00> : vector<32x24xf32>
    %3 = tpu.matmul %1, %2, %cst {dimension_numbers = #tpu.dot_dimension_numbers<[1], [0], [0], [1], [0, 0, 1, 1], [], []>} : vector<32x32xf32>, vector<32x24xf32>, vector<32x24xf32> -> vector<32x24xf32>
    %4 = vector.extract_strided_slice %3 {offsets = [0, 0], sizes = [32, 8], strides = [1, 1]} : vector<32x24xf32> to vector<32x8xf32>
    %5 = vector.shape_cast %4 : vector<32x8xf32> to vector<2x16x8xf32>
    %6 = vector.extract_strided_slice %3 {offsets = [0, 8], sizes = [32, 8], strides = [1, 1]} : vector<32x24xf32> to vector<32x8xf32>
    %7 = vector.shape_cast %6 : vector<32x8xf32> to vector<2x16x8xf32>
    %8 = vector.extract_strided_slice %3 {offsets = [0, 16], sizes = [32, 8], strides = [1, 1]} : vector<32x24xf32> to vector<32x8xf32>
    %9 = vector.shape_cast %8 : vector<32x8xf32> to vector<2x16x8xf32>
    "tpu.trace_start"() <{level = 10 : i32, message = "bqh,bkh->bqk"}> : () -> ()
    %cst_4 = arith.constant dense<0.000000e+00> : vector<2x16x16xf32>
    %10 = tpu.matmul %5, %7, %cst_4 {dimension_numbers = #tpu.dot_dimension_numbers<[2], [2], [1], [1], [0, 0, 0, 1, 1, 1], [0], [0]>} : vector<2x16x8xf32>, vector<2x16x8xf32>, vector<2x16x16xf32> -> vector<2x16x16xf32>
    "tpu.trace_stop"() : () -> ()
    %11 = tpu.iota {dimensions = array<i32: 1>} : vector<2x16x16xi32>
    %12 = tpu.iota {dimensions = array<i32: 2>} : vector<2x16x16xi32>
    %c0_5 = arith.constant 0 : index
    %c0_6 = arith.constant 0 : index
    %13 = vector.load %arg3[%c0_5, %c0_6] : memref<2x1xi32, #tpu.memory_space<vmem>>, vector<2x1xi32>
    %14 = vector.shape_cast %13 : vector<2x1xi32> to vector<2x1x1xi32>
    %15 = vector.broadcast %14 : vector<2x1x1xi32> to vector<2x16x16xi32>
    %16 = arith.cmpi slt, %11, %15 : vector<2x16x16xi32>
    %17 = vector.broadcast %14 : vector<2x1x1xi32> to vector<2x16x16xi32>
    %18 = arith.cmpi slt, %12, %17 : vector<2x16x16xi32>
    %19 = arith.andi %16, %18 : vector<2x16x16xi1>
    %cst_7 = arith.constant 0xFF800000 : f32
    %20 = vector.broadcast %cst_7 : f32 to vector<2x16x16xf32>
    %21 = arith.select %19, %10, %20 : vector<2x16x16xi1>, vector<2x16x16xf32>
    %22 = arith.extui %19 : vector<2x16x16xi1> to vector<2x16x16xi32>
    %23 = arith.sitofp %22 : vector<2x16x16xi32> to vector<2x16x16xf32>
    %cst_8 = arith.constant dense<0.000000e+00> : vector<2x16xf32>
    %24 = vector.multi_reduction <add>, %23, %cst_8 [2] : vector<2x16x16xf32> to vector<2x16xf32>
    %25 = vector.shape_cast %24 : vector<2x16xf32> to vector<2x16x1xf32>
    %cst_9 = arith.constant 0.000000e+00 : f32
    %26 = vector.broadcast %cst_9 : f32 to vector<2x16x1xf32>
    %27 = arith.cmpf oeq, %25, %26 : vector<2x16x1xf32>
    %cst_10 = arith.constant dense<0xFF800000> : vector<2x16xf32>
    %28 = vector.multi_reduction <maximumf>, %21, %cst_10 [2] : vector<2x16x16xf32> to vector<2x16xf32>
    %29 = vector.shape_cast %28 : vector<2x16xf32> to vector<2x16x1xf32>
    %cst_11 = arith.constant 0.000000e+00 : f32
    %30 = vector.broadcast %cst_11 : f32 to vector<2x16x1xf32>
    %31 = arith.select %27, %30, %29 : vector<2x16x1xi1>, vector<2x16x1xf32>
    %32 = vector.broadcast %31 : vector<2x16x1xf32> to vector<2x16x16xf32>
    %33 = arith.subf %21, %32 : vector<2x16x16xf32>
    %34 = math.exp %33 : vector<2x16x16xf32>
    %cst_12 = arith.constant dense<0.000000e+00> : vector<2x16xf32>
    %35 = vector.multi_reduction <add>, %34, %cst_12 [2] : vector<2x16x16xf32> to vector<2x16xf32>
    %36 = vector.shape_cast %35 : vector<2x16xf32> to vector<2x16x1xf32>
    %cst_13 = arith.constant 1.000000e+00 : f32
    %37 = vector.broadcast %cst_13 : f32 to vector<2x16x1xf32>
    %38 = arith.select %27, %37, %36 : vector<2x16x1xi1>, vector<2x16x1xf32>
    %39 = tpu.reciprocal %38 {approx = true} : vector<2x16x1xf32> -> vector<2x16x1xf32>
    %40 = vector.broadcast %39 : vector<2x16x1xf32> to vector<2x16x16xf32>
    %41 = arith.mulf %34, %40 : vector<2x16x16xf32>
    %cst_14 = arith.constant 0.000000e+00 : f32
    %42 = vector.shape_cast %27 : vector<2x16x1xi1> to vector<2x16x1xi1>
    %43 = vector.broadcast %42 : vector<2x16x1xi1> to vector<2x16x16xi1>
    %44 = vector.broadcast %cst_14 : f32 to vector<2x16x16xf32>
    %45 = arith.select %43, %44, %41 : vector<2x16x16xi1>, vector<2x16x16xf32>
    "tpu.trace_start"() <{level = 10 : i32, message = "bqk,bkh->bqh"}> : () -> ()
    %cst_15 = arith.constant dense<0.000000e+00> : vector<2x16x8xf32>
    %46 = tpu.matmul %45, %9, %cst_15 {dimension_numbers = #tpu.dot_dimension_numbers<[2], [1], [1], [2], [0, 0, 0, 1, 1, 2], [0], [0]>} : vector<2x16x16xf32>, vector<2x16x8xf32>, vector<2x16x8xf32> -> vector<2x16x8xf32>
    "tpu.trace_stop"() : () -> ()
    %c0_16 = arith.constant 0 : index
    %c0_17 = arith.constant 0 : index
    %c0_18 = arith.constant 0 : index
    %47 = vector.load %arg4[%c0_16, %c0_17, %c0_18] : memref<2x16x8xf32, #tpu.memory_space<vmem>>, vector<2x16x8xf32>
    tpu.vector_store %arg4[%c0_16, %c0_17, %c0_18], %46 {strides = array<i32>} : memref<2x16x8xf32, #tpu.memory_space<vmem>>, vector<2x16x8xf32>,
    return
  }
  func.func @transform_0(%arg0: i32) -> (i32, i32, i32) {
    %c0_i32 = arith.constant 0 : i32
    %c0_i32_0 = arith.constant 0 : i32
    %c0_i32_1 = arith.constant 0 : i32
    %c0_i32_2 = arith.constant 0 : i32
    return %c0_i32, %c0_i32_0, %c0_i32_1 : i32, i32, i32
  }
  func.func @transform_1(%arg0: i32) -> (i32, i32) {
    %c0_i32 = arith.constant 0 : i32
    %c0_i32_0 = arith.constant 0 : i32
    %c0_i32_1 = arith.constant 0 : i32
    return %c0_i32, %c0_i32_0 : i32, i32
  }
  func.func @transform_2(%arg0: i32) -> (i32, i32) {
    %c0_i32 = arith.constant 0 : i32
    %c0_i32_0 = arith.constant 0 : i32
    %c0_i32_1 = arith.constant 0 : i32
    return %c0_i32, %c0_i32_0 : i32, i32
  }
  func.func @transform_3(%arg0: i32) -> (i32, i32, i32) {
    %c0_i32 = arith.constant 0 : i32
    %c0_i32_0 = arith.constant 0 : i32
    %c0_i32_1 = arith.constant 0 : i32
    %c0_i32_2 = arith.constant 0 : i32
    return %c0_i32, %c0_i32_0, %c0_i32_1 : i32, i32, i32
  }
}

</mosaic_0001>

<llo_original>
// kernel: tpu_custom_call.1
$region0: #{tpu_custom_call.1}
  #allocation0 [shape = 'u32[]', space=smem, size = 0x4, offset = 0x4, fixed_abs, tag = 'smem constant byte address 0x4 - core index']
  #allocation1 [shape = 'u32[72,128]{1,0:T(1,128)}', space=vmem, size = 0x9000, scoped, tag = 'internal scratch']
  %s0 = inlined_call_operand.vmem [shape: f32[2,16,32], index: 0, kind: input, shape index: {}]
  %s1 = inlined_call_operand.vmem [shape: f32[32,24], index: 1, kind: input, shape index: {}]
  %s2 = inlined_call_operand.vmem [shape: s32[2,1], index: 2, kind: input, shape index: {}]
  %s3 = inlined_call_operand.vmem [shape: f32[2,16,8], index: 3, kind: output, shape index: {}]
  %s4 = sld [smem:[#allocation0]]
  $region22: #{tpu_custom_call.1} parent=0
    _
  %s6 = ssub.s32 1, %s4
  %s7 = scalar_select 0, %s6, %s4
  // Predicated region
  $region2: #{tpu_custom_call.1} parent=0 // pred_check
    _
  $region3: #{tpu_custom_call.1} parent=0 // pred_check_branch
    %9 = sbr.rel (0) target = $region5
  $region4: #{tpu_custom_call.1} parent=0 // pred_region
    _
  $region5: #{tpu_custom_call.1} parent=0 // pred_fallthru
    _
  // Predicated region
  $region6: #{tpu_custom_call.1} parent=0 // pred_check
    _
  $region7: #{tpu_custom_call.1} parent=0 // pred_check_branch
    %11 = sbr.rel (0) target = $region9
  $region8: #{tpu_custom_call.1} parent=0 // pred_region
    _
  $region9: #{tpu_custom_call.1} parent=0 // pred_fallthru
    _
  // Predicated region
  $region10: #{tpu_custom_call.1} parent=0 // pred_check
    _
  $region11: #{tpu_custom_call.1} parent=0 // pred_check_branch
    %13 = sbr.rel (0) target = $region13
  $region12: #{tpu_custom_call.1} parent=0 // pred_region
    _
  $region13: #{tpu_custom_call.1} parent=0 // pred_fallthru
    _
  %v14 = vld [vmem:[%s0] sm:$0xff]
  %v15 = vld [vmem:[%s0 + $0x8] sm:$0xff]
  %v16 = vld [vmem:[%s0 + $0x10] sm:$0xff]
  %v17 = vld [vmem:[%s0 + $0x18] sm:$0xff]
  %v18 = vld [vmem:[%s1] sm:$0xff]
  %v19 = vld [vmem:[%s1 + $0x8] sm:$0xff]
  %v20 = vld [vmem:[%s1 + $0x10] sm:$0xff]
  %v21 = vld [vmem:[%s1 + $0x18] sm:$0xff]
  %vm22 = vcmask 261120
  %v24 = vsel %vm22, %v14, 0
  %v27 = vsel %vm22, %v15, 0
  %v30 = vsel %vm22, %v16, 0
  %v33 = vsel %vm22, %v17, 0
  %35 = vmatpush.msra.mxu0 0.0
  %36 = vmatpush.msra.mxu0 0.0
  %37 = vmatpush.msra.mxu0 0.0
  %38 = vmatpush.msra.mxu0 0.0
  %39 = vmatpush.msra.mxu0 0.0
  %40 = vmatpush.msra.mxu0 0.0
  %41 = vmatpush.msra.mxu0 0.0
  %42 = vmatpush.msra.mxu0 0.0
  %43 = vmatpush.msra.mxu0 0.0
  %44 = vmatpush.msra.mxu0 0.0
  %45 = vmatpush.msra.mxu0 0.0
  %46 = vmatpush.msra.mxu0 0.0
  %47 = vmatpush.msra.mxu0 %v21
  %48 = vmatpush.msra.mxu0 %v20
  %49 = vmatpush.msra.mxu0 %v19
  %50 = vmatpush.msra.mxu0 %v18
  %51 = vmatmul.f32.gmra.mxu0 %v24
  %v52 = vpop.f32.mrf.mxu0
  %v53 = vadd.f32 0.0, %v52
  %54 = vmatmul.f32.gmra.mxu0 %v27
  %v55 = vpop.f32.mrf.mxu0
  %v56 = vadd.f32 0.0, %v55
  %57 = vmatmul.f32.gmra.mxu0 %v30
  %v58 = vpop.f32.mrf.mxu0
  %v59 = vadd.f32 0.0, %v58
  %60 = vmatmul.f32.gmra.mxu0 %v33
  %v61 = vpop.f32.mrf.mxu0
  %v62 = vadd.f32 0.0, %v61
  %63 = vdwg.mxu0
  %66 = vrot.lane.b32.xlu0 %v53, 120
  %v67 = vpop.permute.xlu0 %66
  %68 = vrot.lane.b32.xlu0 %v56, 120
  %v69 = vpop.permute.xlu0 %68
  %vm70 = vcmask 64512
  %v71 = vsel %vm70, %v53, 0
  %v73 = vsel %vm70, %v56, 0
  %v75 = vsel %vm70, %v67, 0
  %v77 = vsel %vm70, %v69, 0
  %79 = vmatpush.xpose.msra.mxu0 0.0
  %80 = vmatpush.xpose.msra.mxu0 0.0
  %81 = vmatpush.xpose.msra.mxu0 0.0
  %82 = vmatpush.xpose.msra.mxu0 0.0
  %83 = vmatpush.xpose.msra.mxu0 0.0
  %84 = vmatpush.xpose.msra.mxu0 0.0
  %85 = vmatpush.xpose.msra.mxu0 0.0
  %86 = vmatpush.xpose.msra.mxu0 0.0
  %87 = vmatpush.xpose.msra.mxu0 0.0
  %88 = vmatpush.xpose.msra.mxu0 0.0
  %89 = vmatpush.xpose.msra.mxu0 0.0
  %90 = vmatpush.xpose.msra.mxu0 0.0
  %91 = vmatpush.xpose.msra.mxu0 0.0
  %92 = vmatpush.xpose.msra.mxu0 0.0
  %93 = vmatpush.xpose.msra.mxu0 %v77
  %94 = vmatpush.xpose.msra.mxu0 %v75
  %95 = vmatmul.f32.gmra.mxu0 %v71
  %v96 = vpop.f32.mrf.mxu0
  %v97 = vadd.f32 0.0, %v96
  %98 = vmatmul.f32.gmra.mxu0 %v73
  %v99 = vpop.f32.mrf.mxu0
  %v100 = vadd.f32 0.0, %v99
  %101 = vdwg.mxu0
  %104 = vrot.lane.b32.xlu0 %v59, 120
  %v105 = vpop.permute.xlu0 %104
  %106 = vrot.lane.b32.xlu0 %v62, 120
  %v107 = vpop.permute.xlu0 %106
  %v108 = vsel %vm70, %v59, 0
  %v110 = vsel %vm70, %v62, 0
  %v112 = vsel %vm70, %v105, 0
  %v114 = vsel %vm70, %v107, 0
  %116 = vmatpush.xpose.msra.mxu0 0.0
  %117 = vmatpush.xpose.msra.mxu0 0.0
  %118 = vmatpush.xpose.msra.mxu0 0.0
  %119 = vmatpush.xpose.msra.mxu0 0.0
  %120 = vmatpush.xpose.msra.mxu0 0.0
  %121 = vmatpush.xpose.msra.mxu0 0.0
  %122 = vmatpush.xpose.msra.mxu0 0.0
  %123 = vmatpush.xpose.msra.mxu0 0.0
  %124 = vmatpush.xpose.msra.mxu0 0.0
  %125 = vmatpush.xpose.msra.mxu0 0.0
  %126 = vmatpush.xpose.msra.mxu0 0.0
  %127 = vmatpush.xpose.msra.mxu0 0.0
  %128 = vmatpush.xpose.msra.mxu0 0.0
  %129 = vmatpush.xpose.msra.mxu0 0.0
  %130 = vmatpush.xpose.msra.mxu0 %v114
  %131 = vmatpush.xpose.msra.mxu0 %v112
  %132 = vmatmul.f32.gmra.mxu0 %v108
  %v133 = vpop.f32.mrf.mxu0
  %v134 = vadd.f32 0.0, %v133
  %135 = vmatmul.f32.gmra.mxu0 %v110
  %v136 = vpop.f32.mrf.mxu0
  %v137 = vadd.f32 0.0, %v136
  %138 = vdwg.mxu0
  %v139 = vlaneseq
  %v140 = vshrl.u32 %v139, 7
  %v141 = vadd.s32 %v140, 8
  %v142 = vlaneseq
  %v143 = vand.u32 %v142, 127
  %v144 = vld [vmem:[%s2] sm:$0x3]
  %v145 = vrot.slane %v144, 1
  %v146 = vperm.slane %v144, 0
  %v147 = vperm.slane %v145, 0
  %148 = vset.pattern.permute.xlu0 0
  %149 = vperm.xlu0 %148, %v146
  %v150 = vpop.permute.xlu0 %149
  %151 = vset.pattern.permute.xlu0 0
  %152 = vperm.xlu0 %151, %v147
  %v153 = vpop.permute.xlu0 %152
  %vm154 = vcmp.lt.s32.totalorder %v140, %v150
  %vm155 = vcmp.lt.s32.totalorder %v141, %v150
  %vm156 = vcmp.lt.s32.totalorder %v140, %v153
  %vm157 = vcmp.lt.s32.totalorder %v141, %v153
  %vm158 = vcmp.lt.s32.totalorder %v143, %v150
  %vm159 = vcmp.lt.s32.totalorder %v143, %v153
  %vm160 = vmand %vm154, %vm158
  %vm161 = vmand %vm155, %vm158
  %vm162 = vmand %vm156, %vm159
  %vm163 = vmand %vm157, %vm159
  %v164 = vsel %vm160, %v97, -inf
  %v165 = vsel %vm161, %v100, -inf
  %v166 = vsel %vm162, %v134, -inf
  %v167 = vsel %vm163, %v137, -inf
  %v168 = vsel %vm160, 1, 0
  %v169 = vsel %vm161, 1, 0
  %v170 = vsel %vm162, 1, 0
  %v171 = vsel %vm163, 1, 0
  %v172 = vcvt.s32.f32 %v168
  %v173 = vcvt.s32.f32 %v169
  %v174 = vcvt.s32.f32 %v170
  %v175 = vcvt.s32.f32 %v171
  %vm176 = vcmask 130048
  %v177 = vsel %vm176, %v172, 0.0
  %178 = vadd.xlane.f32.xlu0 %v177
  %v179 = vpop.xlane.xlu0 %178
  %v180 = vsel %vm176, %v173, 0.0
  %181 = vadd.xlane.f32.xlu0 %v180
  %v182 = vpop.xlane.xlu0 %181
  %v183 = vsel %vm176, %v174, 0.0
  %184 = vadd.xlane.f32.xlu0 %v183
  %v185 = vpop.xlane.xlu0 %184
  %v186 = vsel %vm176, %v175, 0.0
  %187 = vadd.xlane.f32.xlu0 %v186
  %v188 = vpop.xlane.xlu0 %187
  %vm189 = vcmp.eq.f32.partialorder %v179, 0.0
  %vm190 = vcmp.eq.f32.partialorder %v182, 0.0
  %vm191 = vcmp.eq.f32.partialorder %v185, 0.0
  %vm192 = vcmp.eq.f32.partialorder %v188, 0.0
  %v193 = vsel %vm176, %v164, -inf
  %194 = vmax.xlane.f32.xlu0 %v193
  %v195 = vpop.xlane.xlu0 %194
  %v196 = vsel %vm176, %v165, -inf
  %197 = vmax.xlane.f32.xlu0 %v196
  %v198 = vpop.xlane.xlu0 %197
  %v199 = vsel %vm176, %v166, -inf
  %200 = vmax.xlane.f32.xlu0 %v199
  %v201 = vpop.xlane.xlu0 %200
  %v202 = vsel %vm176, %v167, -inf
  %203 = vmax.xlane.f32.xlu0 %v202
  %v204 = vpop.xlane.xlu0 %203
  %v205 = vsel %vm189, 0.0, %v195
  %v206 = vsel %vm190, 0.0, %v198
  %v207 = vsel %vm191, 0.0, %v201
  %v208 = vsel %vm192, 0.0, %v204
  %v209 = vsub.f32 %v164, %v205
  %v210 = vsub.f32 %v165, %v206
  %v211 = vsub.f32 %v166, %v207
  %v212 = vsub.f32 %v167, %v208
  %v213 = vmul.f32 %v209, 1.442695
  %v214 = vpow.pop %v213
  %v215 = vmul.f32 %v210, 1.442695
  %v216 = vpow.pop %v215
  %v217 = vmul.f32 %v211, 1.442695
  %v218 = vpow.pop %v217
  %v219 = vmul.f32 %v212, 1.442695
  %v220 = vpow.pop %v219
  %v221 = vsel %vm176, %v214, 0.0
  %222 = vadd.xlane.f32.xlu0 %v221
  %v223 = vpop.xlane.xlu0 %222
  %v224 = vsel %vm176, %v216, 0.0
  %225 = vadd.xlane.f32.xlu0 %v224
  %v226 = vpop.xlane.xlu0 %225
  %v227 = vsel %vm176, %v218, 0.0
  %228 = vadd.xlane.f32.xlu0 %v227
  %v229 = vpop.xlane.xlu0 %228
  %v230 = vsel %vm176, %v220, 0.0
  %231 = vadd.xlane.f32.xlu0 %v230
  %v232 = vpop.xlane.xlu0 %231
  %v233 = vsel %vm189, 1.0, %v223
  %v234 = vsel %vm190, 1.0, %v226
  %v235 = vsel %vm191, 1.0, %v229
  %v236 = vsel %vm192, 1.0, %v232
  %v237 = vrcp.pop %v233
  %v238 = vrcp.pop %v234
  %v239 = vrcp.pop %v235
  %v240 = vrcp.pop %v236
  %v241 = vmul.f32 %v214, %v237
  %v242 = vmul.f32 %v216, %v238
  %v243 = vmul.f32 %v218, %v239
  %v244 = vmul.f32 %v220, %v240
  %v245 = vsel %vm189, 1, 0
  %v246 = vsel %vm190, 1, 0
  %v247 = vsel %vm191, 1, 0
  %v248 = vsel %vm192, 1, 0
  %vm249 = vcmp.eq.s32.totalorder %v245, 1
  %vm250 = vcmp.eq.s32.totalorder %v246, 1
  %vm251 = vcmp.eq.s32.totalorder %v247, 1
  %vm252 = vcmp.eq.s32.totalorder %v248, 1
  %v253 = vsel %vm249, 0.0, %v241
  %v254 = vsel %vm250, 0.0, %v242
  %v255 = vsel %vm251, 0.0, %v243
  %v256 = vsel %vm252, 0.0, %v244
  %257 = vrot.lane.b32.xlu0 %v53, 112
  %v258 = vpop.permute.xlu0 %257
  %259 = vrot.lane.b32.xlu0 %v56, 112
  %v260 = vpop.permute.xlu0 %259
  %v264 = vsel %vm176, %v253, 0
  %v267 = vsel %vm176, %v254, 0
  %269 = vmatpush.msra.mxu0 0.0
  %270 = vmatpush.msra.mxu0 0.0
  %271 = vmatpush.msra.mxu0 0.0
  %272 = vmatpush.msra.mxu0 0.0
  %273 = vmatpush.msra.mxu0 0.0
  %274 = vmatpush.msra.mxu0 0.0
  %275 = vmatpush.msra.mxu0 0.0
  %276 = vmatpush.msra.mxu0 0.0
  %277 = vmatpush.msra.mxu0 0.0
  %278 = vmatpush.msra.mxu0 0.0
  %279 = vmatpush.msra.mxu0 0.0
  %280 = vmatpush.msra.mxu0 0.0
  %281 = vmatpush.msra.mxu0 0.0
  %282 = vmatpush.msra.mxu0 0.0
  %283 = vmatpush.msra.mxu0 %v260
  %284 = vmatpush.msra.mxu0 %v258
  %285 = vmatmul.f32.gmra.mxu0 %v264
  %v286 = vpop.f32.mrf.mxu0
  %v287 = vadd.f32 0.0, %v286
  %288 = vmatmul.f32.gmra.mxu0 %v267
  %v289 = vpop.f32.mrf.mxu0
  %v290 = vadd.f32 0.0, %v289
  %291 = vdwg.mxu0
  %292 = vrot.lane.b32.xlu0 %v59, 112
  %v293 = vpop.permute.xlu0 %292
  %294 = vrot.lane.b32.xlu0 %v62, 112
  %v295 = vpop.permute.xlu0 %294
  %v299 = vsel %vm176, %v255, 0
  %v302 = vsel %vm176, %v256, 0
  %304 = vmatpush.msra.mxu0 0.0
  %305 = vmatpush.msra.mxu0 0.0
  %306 = vmatpush.msra.mxu0 0.0
  %307 = vmatpush.msra.mxu0 0.0
  %308 = vmatpush.msra.mxu0 0.0
  %309 = vmatpush.msra.mxu0 0.0
  %310 = vmatpush.msra.mxu0 0.0
  %311 = vmatpush.msra.mxu0 0.0
  %312 = vmatpush.msra.mxu0 0.0
  %313 = vmatpush.msra.mxu0 0.0
  %314 = vmatpush.msra.mxu0 0.0
  %315 = vmatpush.msra.mxu0 0.0
  %316 = vmatpush.msra.mxu0 0.0
  %317 = vmatpush.msra.mxu0 0.0
  %318 = vmatpush.msra.mxu0 %v295
  %319 = vmatpush.msra.mxu0 %v293
  %320 = vmatmul.f32.gmra.mxu0 %v299
  %v321 = vpop.f32.mrf.mxu0
  %v322 = vadd.f32 0.0, %v321
  %323 = vmatmul.f32.gmra.mxu0 %v302
  %v324 = vpop.f32.mrf.mxu0
  %v325 = vadd.f32 0.0, %v324
  %326 = vdwg.mxu0
  %327 = vst.msk [vmem:[%s3] sm:$0xff] %vm70, %v287
  %328 = vst.msk [vmem:[%s3 + $0x8] sm:$0xff] %vm70, %v290
  %329 = vst.msk [vmem:[%s3 + $0x10] sm:$0xff] %vm70, %v322
  %330 = vst.msk [vmem:[%s3 + $0x18] sm:$0xff] %vm70, %v325
  // Predicated region
  $region14: #{tpu_custom_call.1} parent=0 // pred_check
    _
  $region15: #{tpu_custom_call.1} parent=0 // pred_check_branch
    %332 = sbr.rel (0) target = $region17
  $region16: #{tpu_custom_call.1} parent=0 // pred_region
    _
  $region17: #{tpu_custom_call.1} parent=0 // pred_fallthru
    _
  // Predicated region
  $region18: #{tpu_custom_call.1} parent=0 // pred_check
    _
  $region19: #{tpu_custom_call.1} parent=0 // pred_check_branch
    %334 = sbr.rel (0) target = $region21
  $region20: #{tpu_custom_call.1} parent=0 // pred_region
    _
  $region21: #{tpu_custom_call.1} parent=0 // pred_fallthru
    _

</llo_original>
